<compile_context>
chip_gen: v7x
topology: tpu7x:2x2x1
jax: 0.10.0
libtpu: 0.0.40
codegen_flags: <defaults>
</compile_context>

<pallas_src>
import functools
import math

import jax
import jax.numpy as jnp
from jax import lax
from jax.experimental import pallas as pl
from jax.experimental.pallas import tpu as pltpu


def prediction_head_transform_kernel(x_ref, w_ref, b_ref, gamma_ref, beta_ref,
                                     o_ref, *, eps, inv_e, matmul_dtype):
    """Fused dense -> gelu(erf) -> LayerNorm for one (TM, H) row tile."""
    # MXU matmul with narrow operands and f32 accumulation.
    x = x_ref[...].astype(matmul_dtype)
    w = w_ref[...].astype(matmul_dtype)
    h = jnp.dot(x, w, preferred_element_type=jnp.float32)
    h = h + b_ref[...].astype(jnp.float32)

    # Exact erf-based gelu (matches ACT2FN['gelu']); lowers to a VPU polynomial.
    h = h * 0.5 * (1.0 + lax.erf(h * (1.0 / math.sqrt(2.0))))

    # One-pass LayerNorm statistics over the embedding (last) dim, f32 math.
    s1 = jnp.sum(h, axis=-1, keepdims=True)
    s2 = jnp.sum(h * h, axis=-1, keepdims=True)
    mean = s1 * inv_e
    var = s2 * inv_e - mean * mean
    inv = lax.rsqrt(var + eps)                       # EUP rsqrt, no VPU divide
    y = (h - mean) * inv * gamma_ref[...].astype(jnp.float32)
    y = y + beta_ref[...].astype(jnp.float32)

    o_ref[...] = y.astype(o_ref.dtype)


def _round_up(x, n):
    return ((x + n - 1) // n) * n


def _pick_row_tile(m, h, e, x_bytes, out_bytes, w_bytes, budget_bytes):
    """Row tile: large enough to amortize per-step overhead, small enough to
    keep >= 4 grid steps (pipelining + dual-TC on v7x) and fit the VMEM budget."""
    sub = 16 if x_bytes == 2 else 8          # sublane packing granularity
    max_tm = 1024

    if m >= 4 * sub:
        cap = _round_up(pl.cdiv(m, 4), sub)  # at least ~4 grid steps
    elif m >= 2 * sub:
        cap = _round_up(pl.cdiv(m, 2), sub)  # at least 2 grid steps
    else:
        cap = _round_up(max(m, 1), sub)      # tiny input: one (padded) block

    tm = min(max_tm, cap)

    def vmem_use(t):
        return (2 * t * h * x_bytes          # double-buffered x tiles
                + 2 * t * e * out_bytes      # double-buffered output tiles
                + h * e * w_bytes            # resident (single-buffered) weight
                + 3 * e * 4                  # bias / gamma / beta
                + 4 * t * e)                 # f32 intermediate headroom

    while tm > sub and vmem_use(tm) > budget_bytes:
        tm -= sub
    return max(sub, tm)


def albert_prediction_head_transform(hidden_states, params, *, eps=1e-12,
                                     matmul_dtype=jnp.bfloat16):
    """hidden_states: (..., H). params = (W[H,E], b[1,E], gamma[1,E], beta[1,E]).
    W is the PyTorch nn.Linear weight pre-transposed to [H, E]."""
    w, b, gamma, beta = params
    H, E = w.shape

    orig_shape = hidden_states.shape
    m = 1
    for d in orig_shape[:-1]:
        m *= int(d)
    x2d = hidden_states.reshape(m, H)

    x_bytes = jnp.dtype(hidden_states.dtype).itemsize
    w_bytes = jnp.dtype(w.dtype).itemsize
    out_bytes = x_bytes

    # VMEM budget scaled to the chip generation (v5e/v6e: 128 MiB, v7x: 64 MiB).
    try:
        vmem_phys = int(pltpu.get_tpu_info().vmem_capacity_bytes)
    except Exception:
        vmem_phys = 64 * 1024 * 1024
    budget = min(64 * 1024 * 1024, int(vmem_phys * 0.55))

    tm = _pick_row_tile(m, H, E, x_bytes, out_bytes, w_bytes, budget)
    grid = (pl.cdiv(m, tm),)

    usage = (2 * tm * H * x_bytes + 2 * tm * E * out_bytes + H * E * w_bytes
             + 3 * E * 4 + 4 * tm * E)
    vmem_limit = min(max(32 * 1024 * 1024, usage + 8 * 1024 * 1024), vmem_phys)

    cost = pl.CostEstimate(
        flops=2 * m * H * E + 10 * m * E,
        transcendentals=m,                                   # rsqrt per row
        bytes_accessed=(m * H * x_bytes + m * E * out_bytes
                        + H * E * w_bytes + 3 * E * 4),
    )

    kernel = functools.partial(prediction_head_transform_kernel, eps=eps,
                               inv_e=1.0 / E, matmul_dtype=matmul_dtype)

    def _run(single_buffer_invariants):
        row_spec = pl.BlockSpec((tm, H), lambda i: (i, 0))
        out_spec = pl.BlockSpec((tm, E), lambda i: (i, 0))
        if single_buffer_invariants:
            # Grid-invariant operands: a second pipeline buffer is pure VMEM waste.
            w_spec = pl.BlockSpec((H, E), lambda i: (0, 0),
                                  pipeline_mode=pl.Buffered(1))
            vec_spec = pl.BlockSpec((1, E), lambda i: (0, 0),
                                    pipeline_mode=pl.Buffered(1))
        else:
            w_spec = pl.BlockSpec((H, E), lambda i: (0, 0))
            vec_spec = pl.BlockSpec((1, E), lambda i: (0, 0))

        out = pl.pallas_call(
            kernel,
            out_shape=jax.ShapeDtypeStruct((m, E), hidden_states.dtype),
            grid_spec=pltpu.PrefetchScalarGridSpec(
                num_scalar_prefetch=0,
                grid=grid,
                in_specs=[row_spec, w_spec, vec_spec, vec_spec, vec_spec],
                out_specs=out_spec,
            ),
            compiler_params=pltpu.CompilerParams(
                dimension_semantics=("parallel",),
                vmem_limit_bytes=vmem_limit,
            ),
            cost_estimate=cost,
        )(x2d, w, b, gamma, beta)
        return jax.block_until_ready(out)

    try:
        out = _run(True)
    except Exception:
        # Fallback if single-buffered pipeline_mode is unsupported in this JAX.
        out = _run(False)

    return out.reshape(*orig_shape[:-1], E)


def reference_transform(hidden_states, params, eps=1e-12):
    """Plain-JAX replica of the PyTorch forward for verification."""
    w, b, gamma, beta = params
    h = hidden_states @ w + b[0]
    h = h * 0.5 * (1.0 + lax.erf(h / math.sqrt(2.0)))
    mean = jnp.mean(h, axis=-1, keepdims=True)
    var = jnp.mean((h - mean) ** 2, axis=-1, keepdims=True)
    return (h - mean) / jnp.sqrt(var + eps) * gamma[0] + beta[0]


if __name__ == "__main__":
    B, S, H, E = 2, 8, 32, 32       # batch, seq, hidden_size, embedding_size
    EPS = 1e-12                      # ALBERT layer_norm_eps

    key = jax.random.PRNGKey(0)
    keys = jax.random.split(key, 5)
    x = jax.random.normal(keys[0], (B, S, H), dtype=jnp.float32)

    # nn.Linear-style init (weight stored pre-transposed to [H, E]).
    bound = 1.0 / math.sqrt(H)
    w = jax.random.uniform(keys[1], (H, E), jnp.float32, -bound, bound)
    b = jax.random.uniform(keys[2], (1, E), jnp.float32, -bound, bound)
    gamma = 1.0 + 0.1 * jax.random.normal(keys[3], (1, E), dtype=jnp.float32)
    beta = 0.1 * jax.random.normal(keys[4], (1, E), dtype=jnp.float32)
    params = (w, b, gamma, beta)

    ref = reference_transform(x, params, eps=EPS)

    # Primary (fast) path: bf16 MXU matmul, f32 gelu/LayerNorm.
    out = albert_prediction_head_transform(x, params, eps=EPS,
                                           matmul_dtype=jnp.bfloat16)
    out = jax.block_until_ready(out)
    assert out.shape == (B, S, E), f"bad output shape {out.shape}"
    assert jnp.allclose(out, ref, atol=2e-2, rtol=2e-2), "bf16-matmul path mismatch"

    # Exact path (f32 matmul) for a tight numerical check of the fused kernel.
    out_f32 = albert_prediction_head_transform(x, params, eps=EPS,
                                               matmul_dtype=jnp.float32)
    out_f32 = jax.block_until_ready(out_f32)
    assert jnp.allclose(out_f32, ref, atol=1e-4, rtol=1e-4), "f32 path mismatch"

    print("KERNEL_OK")
</pallas_src>

<mosaic_0001>
module attributes {stable_mosaic.version = 11 : i64} {
  func.func @prediction_head_transform_kernel(%arg0: i32, %arg1: memref<8x32xf32, #tpu.memory_space<vmem>>, %arg2: memref<32x32xf32, #tpu.memory_space<vmem>>, %arg3: memref<1x32xf32, #tpu.memory_space<vmem>>, %arg4: memref<1x32xf32, #tpu.memory_space<vmem>>, %arg5: memref<1x32xf32, #tpu.memory_space<vmem>>, %arg6: memref<8x32xf32, #tpu.memory_space<vmem>>) attributes {dimension_semantics = [#tpu.dimension_semantics<parallel>], iteration_bounds = array<i64: 2>, scalar_prefetch = 0 : i64, scratch_operands = 0 : i64, tpu.core_type = #tpu.core_type<tc>, window_params = [{transform_indices = @transform_0, window_bounds = array<i64: 8, 32>}, {pipeline_mode = #tpu.pipeline_mode<synchronous>, transform_indices = @transform_1, window_bounds = array<i64: 32, 32>}, {pipeline_mode = #tpu.pipeline_mode<synchronous>, transform_indices = @transform_2, window_bounds = array<i64: 1, 32>}, {pipeline_mode = #tpu.pipeline_mode<synchronous>, transform_indices = @transform_3, window_bounds = array<i64: 1, 32>}, {pipeline_mode = #tpu.pipeline_mode<synchronous>, transform_indices = @transform_4, window_bounds = array<i64: 1, 32>}, {transform_indices = @transform_5, window_bounds = array<i64: 8, 32>}]} {
    %c0 = arith.constant 0 : index
    %c0_0 = arith.constant 0 : index
    %0 = vector.load %arg1[%c0, %c0_0] : memref<8x32xf32, #tpu.memory_space<vmem>>, vector<8x32xf32>
    %1 = arith.truncf %0 : vector<8x32xf32> to vector<8x32xbf16>
    %c0_1 = arith.constant 0 : index
    %c0_2 = arith.constant 0 : index
    %2 = vector.load %arg2[%c0_1, %c0_2] : memref<32x32xf32, #tpu.memory_space<vmem>>, vector<32x32xf32>
    %3 = arith.truncf %2 : vector<32x32xf32> to vector<32x32xbf16>
    %cst = arith.constant dense<0.000000e+00> : vector<8x32xf32>
    %4 = tpu.matmul %1, %3, %cst {dimension_numbers = #tpu.dot_dimension_numbers<[1], [0], [0], [1], [0, 0, 1, 1], [], []>} : vector<8x32xbf16>, vector<32x32xbf16>, vector<8x32xf32> -> vector<8x32xf32>
    %c0_3 = arith.constant 0 : index
    %c0_4 = arith.constant 0 : index
    %5 = vector.load %arg3[%c0_3, %c0_4] : memref<1x32xf32, #tpu.memory_space<vmem>>, vector<1x32xf32>
    %6 = vector.broadcast %5 : vector<1x32xf32> to vector<8x32xf32>
    %7 = arith.addf %4, %6 : vector<8x32xf32>
    %cst_5 = arith.constant 5.000000e-01 : f32
    %8 = vector.broadcast %cst_5 : f32 to vector<8x32xf32>
    %9 = arith.mulf %7, %8 : vector<8x32xf32>
    %cst_6 = arith.constant 0.707106769 : f32
    %10 = vector.broadcast %cst_6 : f32 to vector<8x32xf32>
    %11 = arith.mulf %7, %10 : vector<8x32xf32>
    %12 = math.erf %11 : vector<8x32xf32>
    %cst_7 = arith.constant 1.000000e+00 : f32
    %13 = vector.broadcast %cst_7 : f32 to vector<8x32xf32>
    %14 = arith.addf %13, %12 : vector<8x32xf32>
    %15 = arith.mulf %9, %14 : vector<8x32xf32>
    %cst_8 = arith.constant dense<0.000000e+00> : vector<8xf32>
    %16 = vector.multi_reduction <add>, %15, %cst_8 [1] : vector<8x32xf32> to vector<8xf32>
    %17 = vector.shape_cast %16 : vector<8xf32> to vector<8x1xf32>
    %18 = arith.mulf %15, %15 : vector<8x32xf32>
    %cst_9 = arith.constant dense<0.000000e+00> : vector<8xf32>
    %19 = vector.multi_reduction <add>, %18, %cst_9 [1] : vector<8x32xf32> to vector<8xf32>
    %20 = vector.shape_cast %19 : vector<8xf32> to vector<8x1xf32>
    %cst_10 = arith.constant 3.125000e-02 : f32
    %21 = vector.broadcast %cst_10 : f32 to vector<8x1xf32>
    %22 = arith.mulf %17, %21 : vector<8x1xf32>
    %cst_11 = arith.constant 3.125000e-02 : f32
    %23 = vector.broadcast %cst_11 : f32 to vector<8x1xf32>
    %24 = arith.mulf %20, %23 : vector<8x1xf32>
    %25 = arith.mulf %22, %22 : vector<8x1xf32>
    %26 = arith.subf %24, %25 : vector<8x1xf32>
    %cst_12 = arith.constant 9.99999996E-13 : f32
    %27 = vector.broadcast %cst_12 : f32 to vector<8x1xf32>
    %28 = arith.addf %26, %27 : vector<8x1xf32>
    %29 = math.rsqrt %28 : vector<8x1xf32>
    %30 = vector.broadcast %22 : vector<8x1xf32> to vector<8x32xf32>
    %31 = arith.subf %15, %30 : vector<8x32xf32>
    %32 = vector.broadcast %29 : vector<8x1xf32> to vector<8x32xf32>
    %33 = arith.mulf %31, %32 : vector<8x32xf32>
    %c0_13 = arith.constant 0 : index
    %c0_14 = arith.constant 0 : index
    %34 = vector.load %arg4[%c0_13, %c0_14] : memref<1x32xf32, #tpu.memory_space<vmem>>, vector<1x32xf32>
    %35 = vector.broadcast %34 : vector<1x32xf32> to vector<8x32xf32>
    %36 = arith.mulf %33, %35 : vector<8x32xf32>
    %c0_15 = arith.constant 0 : index
    %c0_16 = arith.constant 0 : index
    %37 = vector.load %arg5[%c0_15, %c0_16] : memref<1x32xf32, #tpu.memory_space<vmem>>, vector<1x32xf32>
    %38 = vector.broadcast %37 : vector<1x32xf32> to vector<8x32xf32>
    %39 = arith.addf %36, %38 : vector<8x32xf32>
    %c0_17 = arith.constant 0 : index
    %c0_18 = arith.constant 0 : index
    %40 = vector.load %arg6[%c0_17, %c0_18] : memref<8x32xf32, #tpu.memory_space<vmem>>, vector<8x32xf32>
    tpu.vector_store %arg6[%c0_17, %c0_18], %39 {strides = array<i32>} : memref<8x32xf32, #tpu.memory_space<vmem>>, vector<8x32xf32>,
    return
  }
  func.func @transform_0(%arg0: i32) -> (i32, i32) {
    %c0_i32 = arith.constant 0 : i32
    %c0_i32_0 = arith.constant 0 : i32
    return %arg0, %c0_i32 : i32, i32
  }
  func.func @transform_1(%arg0: i32) -> (i32, i32) {
    %c0_i32 = arith.constant 0 : i32
    %c0_i32_0 = arith.constant 0 : i32
    %c0_i32_1 = arith.constant 0 : i32
    return %c0_i32, %c0_i32_0 : i32, i32
  }
  func.func @transform_2(%arg0: i32) -> (i32, i32) {
    %c0_i32 = arith.constant 0 : i32
    %c0_i32_0 = arith.constant 0 : i32
    %c0_i32_1 = arith.constant 0 : i32
    return %c0_i32, %c0_i32_0 : i32, i32
  }
  func.func @transform_3(%arg0: i32) -> (i32, i32) {
    %c0_i32 = arith.constant 0 : i32
    %c0_i32_0 = arith.constant 0 : i32
    %c0_i32_1 = arith.constant 0 : i32
    return %c0_i32, %c0_i32_0 : i32, i32
  }
  func.func @transform_4(%arg0: i32) -> (i32, i32) {
    %c0_i32 = arith.constant 0 : i32
    %c0_i32_0 = arith.constant 0 : i32
    %c0_i32_1 = arith.constant 0 : i32
    return %c0_i32, %c0_i32_0 : i32, i32
  }
  func.func @transform_5(%arg0: i32) -> (i32, i32) {
    %c0_i32 = arith.constant 0 : i32
    %c0_i32_0 = arith.constant 0 : i32
    return %arg0, %c0_i32 : i32, i32
  }
}

module attributes {stable_mosaic.version = 11 : i64} {
  func.func @prediction_head_transform_kernel(%arg0: i32, %arg1: memref<8x32xf32, #tpu.memory_space<vmem>>, %arg2: memref<32x32xf32, #tpu.memory_space<vmem>>, %arg3: memref<1x32xf32, #tpu.memory_space<vmem>>, %arg4: memref<1x32xf32, #tpu.memory_space<vmem>>, %arg5: memref<1x32xf32, #tpu.memory_space<vmem>>, %arg6: memref<8x32xf32, #tpu.memory_space<vmem>>) attributes {dimension_semantics = [#tpu.dimension_semantics<parallel>], iteration_bounds = array<i64: 2>, scalar_prefetch = 0 : i64, scratch_operands = 0 : i64, tpu.core_type = #tpu.core_type<tc>, window_params = [{transform_indices = @transform_0, window_bounds = array<i64: 8, 32>}, {pipeline_mode = #tpu.pipeline_mode<synchronous>, transform_indices = @transform_1, window_bounds = array<i64: 32, 32>}, {pipeline_mode = #tpu.pipeline_mode<synchronous>, transform_indices = @transform_2, window_bounds = array<i64: 1, 32>}, {pipeline_mode = #tpu.pipeline_mode<synchronous>, transform_indices = @transform_3, window_bounds = array<i64: 1, 32>}, {pipeline_mode = #tpu.pipeline_mode<synchronous>, transform_indices = @transform_4, window_bounds = array<i64: 1, 32>}, {transform_indices = @transform_5, window_bounds = array<i64: 8, 32>}]} {
    %c0 = arith.constant 0 : index
    %c0_0 = arith.constant 0 : index
    %0 = vector.load %arg1[%c0, %c0_0] : memref<8x32xf32, #tpu.memory_space<vmem>>, vector<8x32xf32>
    %1 = arith.truncf %0 : vector<8x32xf32> to vector<8x32xbf16>
    %c0_1 = arith.constant 0 : index
    %c0_2 = arith.constant 0 : index
    %2 = vector.load %arg2[%c0_1, %c0_2] : memref<32x32xf32, #tpu.memory_space<vmem>>, vector<32x32xf32>
    %3 = arith.truncf %2 : vector<32x32xf32> to vector<32x32xbf16>
    %cst = arith.constant dense<0.000000e+00> : vector<8x32xf32>
    %4 = tpu.matmul %1, %3, %cst {dimension_numbers = #tpu.dot_dimension_numbers<[1], [0], [0], [1], [0, 0, 1, 1], [], []>} : vector<8x32xbf16>, vector<32x32xbf16>, vector<8x32xf32> -> vector<8x32xf32>
    %c0_3 = arith.constant 0 : index
    %c0_4 = arith.constant 0 : index
    %5 = vector.load %arg3[%c0_3, %c0_4] : memref<1x32xf32, #tpu.memory_space<vmem>>, vector<1x32xf32>
    %6 = vector.broadcast %5 : vector<1x32xf32> to vector<8x32xf32>
    %7 = arith.addf %4, %6 : vector<8x32xf32>
    %cst_5 = arith.constant 5.000000e-01 : f32
    %8 = vector.broadcast %cst_5 : f32 to vector<8x32xf32>
    %9 = arith.mulf %7, %8 : vector<8x32xf32>
    %cst_6 = arith.constant 0.707106769 : f32
    %10 = vector.broadcast %cst_6 : f32 to vector<8x32xf32>
    %11 = arith.mulf %7, %10 : vector<8x32xf32>
    %12 = math.erf %11 : vector<8x32xf32>
    %cst_7 = arith.constant 1.000000e+00 : f32
    %13 = vector.broadcast %cst_7 : f32 to vector<8x32xf32>
    %14 = arith.addf %13, %12 : vector<8x32xf32>
    %15 = arith.mulf %9, %14 : vector<8x32xf32>
    %cst_8 = arith.constant dense<0.000000e+00> : vector<8xf32>
    %16 = vector.multi_reduction <add>, %15, %cst_8 [1] : vector<8x32xf32> to vector<8xf32>
    %17 = vector.shape_cast %16 : vector<8xf32> to vector<8x1xf32>
    %18 = arith.mulf %15, %15 : vector<8x32xf32>
    %cst_9 = arith.constant dense<0.000000e+00> : vector<8xf32>
    %19 = vector.multi_reduction <add>, %18, %cst_9 [1] : vector<8x32xf32> to vector<8xf32>
    %20 = vector.shape_cast %19 : vector<8xf32> to vector<8x1xf32>
    %cst_10 = arith.constant 3.125000e-02 : f32
    %21 = vector.broadcast %cst_10 : f32 to vector<8x1xf32>
    %22 = arith.mulf %17, %21 : vector<8x1xf32>
    %cst_11 = arith.constant 3.125000e-02 : f32
    %23 = vector.broadcast %cst_11 : f32 to vector<8x1xf32>
    %24 = arith.mulf %20, %23 : vector<8x1xf32>
    %25 = arith.mulf %22, %22 : vector<8x1xf32>
    %26 = arith.subf %24, %25 : vector<8x1xf32>
    %cst_12 = arith.constant 9.99999996E-13 : f32
    %27 = vector.broadcast %cst_12 : f32 to vector<8x1xf32>
    %28 = arith.addf %26, %27 : vector<8x1xf32>
    %29 = math.rsqrt %28 : vector<8x1xf32>
    %30 = vector.broadcast %22 : vector<8x1xf32> to vector<8x32xf32>
    %31 = arith.subf %15, %30 : vector<8x32xf32>
    %32 = vector.broadcast %29 : vector<8x1xf32> to vector<8x32xf32>
    %33 = arith.mulf %31, %32 : vector<8x32xf32>
    %c0_13 = arith.constant 0 : index
    %c0_14 = arith.constant 0 : index
    %34 = vector.load %arg4[%c0_13, %c0_14] : memref<1x32xf32, #tpu.memory_space<vmem>>, vector<1x32xf32>
    %35 = vector.broadcast %34 : vector<1x32xf32> to vector<8x32xf32>
    %36 = arith.mulf %33, %35 : vector<8x32xf32>
    %c0_15 = arith.constant 0 : index
    %c0_16 = arith.constant 0 : index
    %37 = vector.load %arg5[%c0_15, %c0_16] : memref<1x32xf32, #tpu.memory_space<vmem>>, vector<1x32xf32>
    %38 = vector.broadcast %37 : vector<1x32xf32> to vector<8x32xf32>
    %39 = arith.addf %36, %38 : vector<8x32xf32>
    %c0_17 = arith.constant 0 : index
    %c0_18 = arith.constant 0 : index
    %40 = vector.load %arg6[%c0_17, %c0_18] : memref<8x32xf32, #tpu.memory_space<vmem>>, vector<8x32xf32>
    tpu.vector_store %arg6[%c0_17, %c0_18], %39 {strides = array<i32>} : memref<8x32xf32, #tpu.memory_space<vmem>>, vector<8x32xf32>,
    return
  }
  func.func @transform_0(%arg0: i32) -> (i32, i32) {
    %c0_i32 = arith.constant 0 : i32
    %c0_i32_0 = arith.constant 0 : i32
    return %arg0, %c0_i32 : i32, i32
  }
  func.func @transform_1(%arg0: i32) -> (i32, i32) {
    %c0_i32 = arith.constant 0 : i32
    %c0_i32_0 = arith.constant 0 : i32
    %c0_i32_1 = arith.constant 0 : i32
    return %c0_i32, %c0_i32_0 : i32, i32
  }
  func.func @transform_2(%arg0: i32) -> (i32, i32) {
    %c0_i32 = arith.constant 0 : i32
    %c0_i32_0 = arith.constant 0 : i32
    %c0_i32_1 = arith.constant 0 : i32
    return %c0_i32, %c0_i32_0 : i32, i32
  }
  func.func @transform_3(%arg0: i32) -> (i32, i32) {
    %c0_i32 = arith.constant 0 : i32
    %c0_i32_0 = arith.constant 0 : i32
    %c0_i32_1 = arith.constant 0 : i32
    return %c0_i32, %c0_i32_0 : i32, i32
  }
  func.func @transform_4(%arg0: i32) -> (i32, i32) {
    %c0_i32 = arith.constant 0 : i32
    %c0_i32_0 = arith.constant 0 : i32
    %c0_i32_1 = arith.constant 0 : i32
    return %c0_i32, %c0_i32_0 : i32, i32
  }
  func.func @transform_5(%arg0: i32) -> (i32, i32) {
    %c0_i32 = arith.constant 0 : i32
    %c0_i32_0 = arith.constant 0 : i32
    return %arg0, %c0_i32 : i32, i32
  }
}

</mosaic_0001>

<llo_original>
// kernel: tpu_custom_call.1
$region0: #{tpu_custom_call.1}
  #allocation0 [shape = 'u32[]', space=smem, size = 0x4, offset = 0x4, fixed_abs, tag = 'smem constant byte address 0x4 - core index']
  #allocation1 [shape = 'u32[144,128]{1,0:T(1,128)}', space=vmem, size = 0x12000, scoped, tag = 'internal scratch']
  %s0 = inlined_call_operand.hbm [shape: f32[16,32], index: 0, kind: input, shape index: {}]
  %s1 = inlined_call_operand.hbm [shape: f32[32,32], index: 1, kind: input, shape index: {}]
  %s2 = inlined_call_operand.vmem [shape: f32[1,32], index: 2, kind: input, shape index: {}]
  %s3 = inlined_call_operand.vmem [shape: f32[1,32], index: 3, kind: input, shape index: {}]
  %s4 = inlined_call_operand.vmem [shape: f32[1,32], index: 4, kind: input, shape index: {}]
  %s5 = inlined_call_operand.hbm [shape: f32[16,32], index: 5, kind: output, shape index: {}]
  %s6 = sld [smem:[#allocation0]]
  $region61: #{tpu_custom_call.1} parent=0
    _
  %s8 = ssub.s32 1, %s6
  %s9 = scalar_select 0, %s8, %s6
  $region1: #{tpu_custom_call.1} parent=0
    #allocation2 [shape = 'u8[8192]{0}', space=vmem, size = 0x2000, scoped, tag = 'input window, operand 0']
    #allocation3 [shape = 's32[2]{0}', space=sflag, size = 0x8, scoped, tag = 'scoped memory for tpu_custom_call.1']
    #allocation4 [shape = 's32[2]{0}', space=sflag, size = 0x8, scoped, tag = 'scoped memory for tpu_custom_call.1']
    #allocation5 [shape = 'u8[16384]{0}', space=vmem, size = 0x4000, scoped, tag = 'input window, operand 1, single buffered']
    #allocation6 [shape = 's32[1]{0}', space=sflag, size = 0x4, scoped, tag = 'scoped memory for tpu_custom_call.1']
    #allocation7 [shape = 'u8[8192]{0}', space=vmem, size = 0x2000, scoped, tag = 'output window, operand 0']
    %10 = vsyncpa [#allocation3], 0
    %s11 = scalar_lea.sflag [#allocation3], 1
    %12 = vsyncpa %s11, 0
    %13 = vsyncpa [#allocation6], 0
    %14 = vsyncpa [#allocation4], 0
    %s15 = scalar_lea.sflag [#allocation4], 1
    %16 = vsyncpa %s15, 0
    loop: start=0, step=1, limit=4
    $region2: #{tpu_custom_call.1} parent=1 // loop_pre_header
      _
    $region3: #{tpu_custom_call.1} parent=1 // loop_header
      %s18 = sphi 0, %s22
      %p19 = scmp.ge.s32.totalorder %s18, 4
      %s28 = sphi 0, %s30
      %s31 = sphi 0, %s28
      %s32 = sphi 0, %s31
      %s48 = sphi 0, %s32
      %s52 = sphi 0, %s52
      %s54 = sphi 0, %s52
      %s55 = sphi 0, %s54
      %s69 = sphi 0, %s55
      %s73 = sphi 0, %s73
      %s75 = sphi 0, %s73
      %s76 = sphi 0, %s75
      %s90 = sphi 0, %s76
      %s94 = sphi 0, %s94
      %s96 = sphi 0, %s94
      %s97 = sphi 0, %s96
      %s111 = sphi 0, %s97
      %s115 = sphi 0, %s115
      %s117 = sphi 0, %s115
      %s118 = sphi 0, %s117
      %s132 = sphi 0, %s118
      %s138 = sphi 0, %s140
      %s141 = sphi 0, %s138
      %s142 = sphi 0, %s141
      %s158 = sphi 0, %s142
    $region4: #{tpu_custom_call.1} parent=1 // loop_header_branch
      %21 = sbr.rel (%p19) target = $region8
    $region5: #{tpu_custom_call.1} parent=1 // loop_body
      %s23 = ssub.s32 %s18, 1
      %s24 = ssub.s32 %s18, 2
      %s25 = sadd.s32 %s18, 1
      %s26 = ssub.s32 %s18, %s25
      %p27 = scmp.eq.s32.totalorder %s26, 0
      %s29 = sadd.s32 %s28, 1
      %s30 = scalar_select %p27, %s28, %s29
      %p33 = pneg %p27
      %p34 = scmp.eq.s32.totalorder %s18, 1
      %p35 = por %p33, %p34
      %p36 = scmp.ne.s32.totalorder %s28, %s31
      %p37 = scmp.eq.s32.totalorder %s18, 0
      %p38 = por %p36, %p37
      %p39 = scmp.ne.s32.totalorder %s28, %s31
      %p40 = scmp.eq.s32.totalorder %s23, 1
      %p41 = por %p39, %p40
      %p42 = scmp.ne.s32.totalorder %s31, %s32
      %p43 = scmp.eq.s32.totalorder %s23, 0
      %p44 = por %p42, %p43
      %p45 = scmp.ne.s32.totalorder %s31, %s32
      %p46 = scmp.eq.s32.totalorder %s24, 1
      %p47 = por %p45, %p46
      %p49 = scmp.ne.s32.totalorder %s32, %s48
      %p50 = scmp.eq.s32.totalorder %s24, 0
      %p51 = por %p49, %p50
      %s53 = sadd.s32 %s52, 1
      %p56 = scmp.eq.s32.totalorder %s18, 1
      %p57 = scmp.ne.s32.totalorder %s52, %s54
      %p58 = scmp.eq.s32.totalorder %s18, 0
      %p59 = por %p57, %p58
      %p60 = scmp.ne.s32.totalorder %s52, %s54
      %p61 = scmp.eq.s32.totalorder %s23, 1
      %p62 = por %p60, %p61
      %p63 = scmp.ne.s32.totalorder %s54, %s55
      %p64 = scmp.eq.s32.totalorder %s23, 0
      %p65 = por %p63, %p64
      %p66 = scmp.ne.s32.totalorder %s54, %s55
      %p67 = scmp.eq.s32.totalorder %s24, 1
      %p68 = por %p66, %p67
      %p70 = scmp.ne.s32.totalorder %s55, %s69
      %p71 = scmp.eq.s32.totalorder %s24, 0
      %p72 = por %p70, %p71
      %s74 = sadd.s32 %s73, 1
      %p77 = scmp.eq.s32.totalorder %s18, 1
      %p78 = scmp.ne.s32.totalorder %s73, %s75
      %p79 = scmp.eq.s32.totalorder %s18, 0
      %p80 = por %p78, %p79
      %p81 = scmp.ne.s32.totalorder %s73, %s75
      %p82 = scmp.eq.s32.totalorder %s23, 1
      %p83 = por %p81, %p82
      %p84 = scmp.ne.s32.totalorder %s75, %s76
      %p85 = scmp.eq.s32.totalorder %s23, 0
      %p86 = por %p84, %p85
      %p87 = scmp.ne.s32.totalorder %s75, %s76
      %p88 = scmp.eq.s32.totalorder %s24, 1
      %p89 = por %p87, %p88
      %p91 = scmp.ne.s32.totalorder %s76, %s90
      %p92 = scmp.eq.s32.totalorder %s24, 0
      %p93 = por %p91, %p92
      %s95 = sadd.s32 %s94, 1
      %p98 = scmp.eq.s32.totalorder %s18, 1
      %p99 = scmp.ne.s32.totalorder %s94, %s96
      %p100 = scmp.eq.s32.totalorder %s18, 0
      %p101 = por %p99, %p100
      %p102 = scmp.ne.s32.totalorder %s94, %s96
      %p103 = scmp.eq.s32.totalorder %s23, 1
      %p104 = por %p102, %p103
      %p105 = scmp.ne.s32.totalorder %s96, %s97
      %p106 = scmp.eq.s32.totalorder %s23, 0
      %p107 = por %p105, %p106
      %p108 = scmp.ne.s32.totalorder %s96, %s97
      %p109 = scmp.eq.s32.totalorder %s24, 1
      %p110 = por %p108, %p109
      %p112 = scmp.ne.s32.totalorder %s97, %s111
      %p113 = scmp.eq.s32.totalorder %s24, 0
      %p114 = por %p112, %p113
      %s116 = sadd.s32 %s115, 1
      %p119 = scmp.eq.s32.totalorder %s18, 1
      %p120 = scmp.ne.s32.totalorder %s115, %s117
      %p121 = scmp.eq.s32.totalorder %s18, 0
      %p122 = por %p120, %p121
      %p123 = scmp.ne.s32.totalorder %s115, %s117
      %p124 = scmp.eq.s32.totalorder %s23, 1
      %p125 = por %p123, %p124
      %p126 = scmp.ne.s32.totalorder %s117, %s118
      %p127 = scmp.eq.s32.totalorder %s23, 0
      %p128 = por %p126, %p127
      %p129 = scmp.ne.s32.totalorder %s117, %s118
      %p130 = scmp.eq.s32.totalorder %s24, 1
      %p131 = por %p129, %p130
      %p133 = scmp.ne.s32.totalorder %s118, %s132
      %p134 = scmp.eq.s32.totalorder %s24, 0
      %p135 = por %p133, %p134
      %s136 = ssub.s32 %s18, %s25
      %p137 = scmp.eq.s32.totalorder %s136, 0
      %s139 = sadd.s32 %s138, 1
      %s140 = scalar_select %p137, %s138, %s139
      %p143 = pneg %p137
      %p144 = scmp.eq.s32.totalorder %s18, 1
      %p145 = por %p143, %p144
      %p146 = scmp.ne.s32.totalorder %s138, %s141
      %p147 = scmp.eq.s32.totalorder %s18, 0
      %p148 = por %p146, %p147
      %p149 = scmp.ne.s32.totalorder %s138, %s141
      %p150 = scmp.eq.s32.totalorder %s23, 1
      %p151 = por %p149, %p150
      %p152 = scmp.ne.s32.totalorder %s141, %s142
      %p153 = scmp.eq.s32.totalorder %s23, 0
      %p154 = por %p152, %p153
      %p155 = scmp.ne.s32.totalorder %s141, %s142
      %p156 = scmp.eq.s32.totalorder %s24, 1
      %p157 = por %p155, %p156
      %p159 = scmp.ne.s32.totalorder %s142, %s158
      %p160 = scmp.eq.s32.totalorder %s24, 0
      %p161 = por %p159, %p160
      %p162 = scmp.le.s32.totalorder 1, %s18
      %p163 = scmp.lt.s32.totalorder %s18, 3
      %p164 = pnand %p162, %p163
      %p165 = pneg %p164
      // Predicated region
      $region9: #{tpu_custom_call.1} parent=5 // pred_check
        _
      $region10: #{tpu_custom_call.1} parent=5 // pred_check_branch
        %167 = sbr.rel (%p164) target = $region12
      $region11: #{tpu_custom_call.1} parent=5 // pred_region
        %s168 = ssub.s32 %s18, 1
        // Predicated region
        $region13: #{tpu_custom_call.1} parent=11 // pred_check
          %p169 = pneg %p65
        $region14: #{tpu_custom_call.1} parent=11 // pred_check_branch
          %171 = sbr.rel (%p169) target = $region16
        $region15: #{tpu_custom_call.1} parent=11 // pred_region
          %s173 = ssub.s32 512, 512
          %174 = vsyncadd [#allocation6], %s173
          %s175 = sshll.u32 [#allocation5], 4
          %s176 = int_to_ptr.vmem [resolvable:$true] %s175
          %181 = dma.hbm_to_vmem [thread:$0]  %s1, 512, %s176, [#allocation6], 128, 128, 8
        $region16: #{tpu_custom_call.1} parent=11 // pred_fallthru
          _
        // Predicated region
        $region17: #{tpu_custom_call.1} parent=11 // pred_check
          %p182 = pneg %p86
        $region18: #{tpu_custom_call.1} parent=11 // pred_check_branch
          %184 = sbr.rel (%p182) target = $region20
        $region19: #{tpu_custom_call.1} parent=11 // pred_region
          _
        $region20: #{tpu_custom_call.1} parent=11 // pred_fallthru
          _
        // Predicated region
        $region21: #{tpu_custom_call.1} parent=11 // pred_check
          %p185 = pneg %p107
        $region22: #{tpu_custom_call.1} parent=11 // pred_check_branch
          %187 = sbr.rel (%p185) target = $region24
        $region23: #{tpu_custom_call.1} parent=11 // pred_region
          _
        $region24: #{tpu_custom_call.1} parent=11 // pred_fallthru
          _
        // Predicated region
        $region25: #{tpu_custom_call.1} parent=11 // pred_check
          %p188 = pneg %p128
        $region26: #{tpu_custom_call.1} parent=11 // pred_check_branch
          %190 = sbr.rel (%p188) target = $region28
        $region27: #{tpu_custom_call.1} parent=11 // pred_region
          _
        $region28: #{tpu_custom_call.1} parent=11 // pred_fallthru
          _
      $region12: #{tpu_custom_call.1} parent=5 // pred_fallthru
        _
      %p191 = scmp.lt.s32.totalorder %s18, 2
      // Predicated region
      $region29: #{tpu_custom_call.1} parent=5 // pred_check
        %p192 = pneg %p191
      $region30: #{tpu_custom_call.1} parent=5 // pred_check_branch
        %194 = sbr.rel (%p192) target = $region32
      $region31: #{tpu_custom_call.1} parent=5 // pred_region
        // Predicated region
        $region33: #{tpu_custom_call.1} parent=31 // pred_check
          %p195 = pneg %p38
        $region34: #{tpu_custom_call.1} parent=31 // pred_check_branch
          %197 = sbr.rel (%p195) target = $region36
        $region35: #{tpu_custom_call.1} parent=31 // pred_region
          %s198 = sand.u32 %s28, 1
          %s199 = scalar_lea.sflag [#allocation3], %s198
          %s200 = sand.u32 %s28, 1
          %s201 = smul.addr %s200, 8
          %s202 = scalar_lea.vmem [#allocation2], %s201
          %s204 = ssub.s32 128, 128
          %205 = vsyncadd %s199, %s204
          %s206 = smul.addr %s18, 128
          %s207 = scalar_lea.hbm %s0, %s206
          %s209 = sshll.u32 %s202, 4
          %s210 = int_to_ptr.vmem [resolvable:$true] %s209
          %212 = dma.hbm_to_vmem [thread:$0]  %s207, 128, %s210, %s199
        $region36: #{tpu_custom_call.1} parent=31 // pred_fallthru
          _
      $region32: #{tpu_custom_call.1} parent=5 // pred_fallthru
        _
      %p213 = scmp.le.s32.totalorder 1, %s18
      %p214 = scmp.lt.s32.totalorder %s18, 3
      %p215 = pnand %p213, %p214
      %p216 = pneg %p215
      // Predicated region
      $region37: #{tpu_custom_call.1} parent=5 // pred_check
        _
      $region38: #{tpu_custom_call.1} parent=5 // pred_check_branch
        %218 = sbr.rel (%p215) target = $region40
      $region39: #{tpu_custom_call.1} parent=5 // pred_region
        %s219 = ssub.s32 %s18, 1
        %s220 = sand.u32 %s31, 1
        %s221 = scalar_lea.sflag [#allocation3], %s220
        %s222 = sand.u32 %s31, 1
        %s223 = smul.addr %s222, 8
        %s224 = scalar_lea.vmem [#allocation2], %s223
        // Predicated region
        $region41: #{tpu_custom_call.1} parent=39 // pred_check
          %p225 = pneg %p44
        $region42: #{tpu_custom_call.1} parent=39 // pred_check_branch
          %227 = sbr.rel (%p225) target = $region44
        $region43: #{tpu_custom_call.1} parent=39 // pred_region
          %228 = dma.done %s221, 128
        $region44: #{tpu_custom_call.1} parent=39 // pred_fallthru
          _
        // Predicated region
        $region45: #{tpu_custom_call.1} parent=39 // pred_check
          %p229 = pneg %p65
        $region46: #{tpu_custom_call.1} parent=39 // pred_check_branch
          %231 = sbr.rel (%p229) target = $region48
        $region47: #{tpu_custom_call.1} parent=39 // pred_region
          %232 = dma.done [#allocation6], 512
        $region48: #{tpu_custom_call.1} parent=39 // pred_fallthru
          _
        %s233 = sand.u32 %s31, 1
        %s234 = scalar_lea.sflag [#allocation3], %s233
        %s235 = sand.u32 %s31, 1
        %s236 = smul.addr %s235, 8
        %s237 = scalar_lea.vmem [#allocation2], %s236
        %p238 = pneg %p44
        %p239 = pneg %p41
        %p240 = pneg %p65
        %p241 = pneg %p62
        %p242 = pneg %p86
        %p243 = pneg %p83
        %p244 = pneg %p107
        %p245 = pneg %p104
        %p246 = pneg %p128
        %p247 = pneg %p125
        %p248 = pneg %p154
        %p249 = pneg %p151
        %s250 = sand.u32 %s141, 1
        %s251 = scalar_lea.sflag [#allocation4], %s250
        %s252 = sand.u32 %s141, 1
        %s253 = smul.addr %s252, 8
        %s254 = scalar_lea.vmem [#allocation7], %s253
        %v256 = vld [vmem:[%s224] sm:$0xff]
        %v257 = vpack.c.bf16 %v256, %v256
        %v258 = vld [vmem:[#allocation5] sm:$0xff]
        %v259 = vld [vmem:[#allocation5 + $0x8] sm:$0xff]
        %v260 = vld [vmem:[#allocation5 + $0x10] sm:$0xff]
        %v261 = vld [vmem:[#allocation5 + $0x18] sm:$0xff]
        %v262 = vpack.c.bf16 %v259, %v258
        %v263 = vpack.c.bf16 %v261, %v260
        %v264 = vld [vmem:[%s2] sm:$0x1]
        %v266 = vlaneseq
        %v267 = vshrl.u32 %v266, 7
        %v268 = vsub.s32 0, %v267
        %v269 = vrot.slane %v264, %v268
        %vm271 = vcmask 261120
        %v273 = vsel %vm271, %v257, 0
        %275 = vmatprep.subr.bf16.mxu0 0
        %276 = vmatpush1.bf16.msra.mxu0 %v262
        %277 = vmatprep.subr.bf16.mxu0 0
        %278 = vmatpush1.bf16.msra.mxu0 %v263
        %279 = vmatprep.subr.bf16.mxu0 0
        %280 = vmatpush1.bf16.msra.mxu0 0
        %281 = vmatprep.subr.bf16.mxu0 0
        %282 = vmatpush1.bf16.msra.mxu0 0
        %283 = vmatprep.subr.bf16.mxu0 0
        %284 = vmatpush1.bf16.msra.mxu0 0
        %285 = vmatprep.subr.bf16.mxu0 0
        %286 = vmatpush1.bf16.msra.mxu0 0
        %287 = vmatprep.subr.bf16.mxu0 0
        %288 = vmatpush1.bf16.msra.mxu0 0
        %289 = vmatprep.subr.bf16.mxu0 0
        %290 = vmatpush1.bf16.msra.mxu0 0
        %291 = vmatprep.subr.bf16.mxu0 0
        %292 = vmatpush1.bf16.msra.mxu0 0
        %293 = vmatprep.subr.bf16.mxu0 0
        %294 = vmatpush1.bf16.msra.mxu0 0
        %295 = vmatprep.subr.bf16.mxu0 0
        %296 = vmatpush1.bf16.msra.mxu0 0
        %297 = vmatprep.subr.bf16.mxu0 0
        %298 = vmatpush1.bf16.msra.mxu0 0
        %299 = vmatprep.subr.bf16.mxu0 0
        %300 = vmatpush1.bf16.msra.mxu0 0
        %301 = vmatprep.subr.bf16.mxu0 0
        %302 = vmatpush1.bf16.msra.mxu0 0
        %303 = vmatprep.subr.bf16.mxu0 0
        %304 = vmatpush1.bf16.msra.mxu0 0
        %305 = vmatprep.subr.bf16.mxu0 0
        %306 = vmatpush1.bf16.msra.mxu0 0
        %307 = vmatprep.mubr.bf16.mxu0 0
        %308 = vmatmul.mubr.bf16.gmra.mrb[0].mxu0 %v273
        %v309 = vpop.f32.mrb[0].mxu0
        %v310 = vadd.f32 %v269, %v309
        %v311 = vpop.f32.mrb[0].mxu0
        %v312 = vpop.f32.mrb[0].mxu0
        %v313 = vpop.f32.mrb[0].mxu0
        %314 = vdwg.mxu0
        %v315 = vmul.f32 %v310, 0.5
        %v316 = vmul.f32 %v310, 0.70710677
        %v317 = verf.f32.pop %v316
        %v318 = vadd.f32 %v317, 1.0
        %v319 = vmul.f32 %v315, %v318
        %v320 = vsel %vm271, %v319, 0.0
        %321 = vadd.xlane.f32.xlu0 %v320
        %v322 = vpop.xlane.xlu0 %321
        %v323 = vmul.f32 %v319, %v319
        %v324 = vsel %vm271, %v323, 0.0
        %325 = vadd.xlane.f32.xlu0 %v324
        %v326 = vpop.xlane.xlu0 %325
        %v327 = vmul.f32 %v322, 0.03125
        %v328 = vmul.f32 %v326, 0.03125
        %v329 = vmul.f32 %v327, %v327
        %v330 = vsub.f32 %v328, %v329
        %v331 = vadd.f32 %v330, 1e-12
        %v332 = vrsqrt.pop %v331
        %v333 = vsub.f32 %v319, %v327
        %v334 = vmul.f32 %v333, %v332
        %v335 = vld [vmem:[%s3] sm:$0x1]
        %v337 = vlaneseq
        %v338 = vshrl.u32 %v337, 7
        %v339 = vsub.s32 0, %v338
        %v340 = vrot.slane %v335, %v339
        %v342 = vmul.f32 %v334, %v340
        %v343 = vld [vmem:[%s4] sm:$0x1]
        %v345 = vlaneseq
        %v346 = vshrl.u32 %v345, 7
        %v347 = vsub.s32 0, %v346
        %v348 = vrot.slane %v343, %v347
        %v350 = vadd.f32 %v342, %v348
        %351 = vst.msk [vmem:[%s254] sm:$0xff] %vm271, %v350
        %s352 = sand.u32 %s141, 1
        %s353 = scalar_lea.sflag [#allocation4], %s352
        %s354 = sand.u32 %s141, 1
        %s355 = smul.addr %s354, 8
        %s356 = scalar_lea.vmem [#allocation7], %s355
        // Predicated region
        $region49: #{tpu_custom_call.1} parent=39 // pred_check
          %p357 = pneg %p151
        $region50: #{tpu_custom_call.1} parent=39 // pred_check_branch
          %359 = sbr.rel (%p357) target = $region52
        $region51: #{tpu_custom_call.1} parent=39 // pred_region
          %s361 = ssub.s32 128, 128
          %362 = vsyncadd %s353, %s361
          %s363 = smul.addr %s23, 128
          %s364 = scalar_lea.hbm %s5, %s363
          %s366 = sshll.u32 %s356, 4
          %s367 = int_to_ptr.vmem [resolvable:$true] %s366
          %369 = dma.vmem_to_hbm [thread:$0]  %s367, 128, %s364, %s353
        $region52: #{tpu_custom_call.1} parent=39 // pred_fallthru
          _
      $region40: #{tpu_custom_call.1} parent=5 // pred_fallthru
        _
      %p370 = scmp.le.s32.totalorder 2, %s18
      // Predicated region
      $region53: #{tpu_custom_call.1} parent=5 // pred_check
        %p371 = pneg %p370
      $region54: #{tpu_custom_call.1} parent=5 // pred_check_branch
        %373 = sbr.rel (%p371) target = $region56
      $region55: #{tpu_custom_call.1} parent=5 // pred_region
        %s374 = ssub.s32 %s18, 2
        // Predicated region
        $region57: #{tpu_custom_call.1} parent=55 // pred_check
          %p375 = pneg %p157
        $region58: #{tpu_custom_call.1} parent=55 // pred_check_branch
          %377 = sbr.rel (%p375) target = $region60
        $region59: #{tpu_custom_call.1} parent=55 // pred_region
          %s378 = sand.u32 %s142, 1
          %s379 = scalar_lea.sflag [#allocation4], %s378
          %s380 = sand.u32 %s142, 1
          %s381 = smul.addr %s380, 8
          %s382 = scalar_lea.vmem [#allocation7], %s381
          %383 = dma.done %s379, 128
        $region60: #{tpu_custom_call.1} parent=55 // pred_fallthru
          _
      $region56: #{tpu_custom_call.1} parent=5 // pred_fallthru
        _
    $region6: #{tpu_custom_call.1} parent=1 // loop_footer
      %s22 = sadd.s32 1, %s18
    $region7: #{tpu_custom_call.1} parent=1 // loop_footer_branch
      %17 = sbr.rel target = $region3
    $region8: #{tpu_custom_call.1} parent=1 // loop_exit
      _
    %384 = vsyncpa [#allocation3], 1
    %s385 = scalar_lea.sflag [#allocation3], 1
    %386 = vsyncpa %s385, 1
    %387 = vsyncpa [#allocation6], 1
    %388 = vsyncpa [#allocation4], 1
    %s389 = scalar_lea.sflag [#allocation4], 1
    %390 = vsyncpa %s389, 1

// kernel: tpu_custom_call.1
$region0: #{tpu_custom_call.1}
  #allocation0 [shape = 'u32[]', space=smem, size = 0x4, offset = 0x4, fixed_abs, tag = 'smem constant byte address 0x4 - core index']
  #allocation1 [shape = 'u32[144,128]{1,0:T(1,128)}', space=vmem, size = 0x12000, scoped, tag = 'internal scratch']
  %s0 = inlined_call_operand.hbm [shape: f32[16,32], index: 0, kind: input, shape index: {}]
  %s1 = inlined_call_operand.hbm [shape: f32[32,32], index: 1, kind: input, shape index: {}]
  %s2 = inlined_call_operand.vmem [shape: f32[1,32], index: 2, kind: input, shape index: {}]
  %s3 = inlined_call_operand.vmem [shape: f32[1,32], index: 3, kind: input, shape index: {}]
  %s4 = inlined_call_operand.vmem [shape: f32[1,32], index: 4, kind: input, shape index: {}]
  %s5 = inlined_call_operand.hbm [shape: f32[16,32], index: 5, kind: output, shape index: {}]
  %s6 = sld [smem:[#allocation0]]
  $region61: #{tpu_custom_call.1} parent=0
    _
  %s8 = ssub.s32 1, %s6
  %s9 = scalar_select 0, %s8, %s6
  $region1: #{tpu_custom_call.1} parent=0
    #allocation2 [shape = 'u8[8192]{0}', space=vmem, size = 0x2000, scoped, tag = 'input window, operand 0']
    #allocation3 [shape = 's32[2]{0}', space=sflag, size = 0x8, scoped, tag = 'scoped memory for tpu_custom_call.1']
    #allocation4 [shape = 's32[2]{0}', space=sflag, size = 0x8, scoped, tag = 'scoped memory for tpu_custom_call.1']
    #allocation5 [shape = 'u8[16384]{0}', space=vmem, size = 0x4000, scoped, tag = 'input window, operand 1, single buffered']
    #allocation6 [shape = 's32[1]{0}', space=sflag, size = 0x4, scoped, tag = 'scoped memory for tpu_custom_call.1']
    #allocation7 [shape = 'u8[8192]{0}', space=vmem, size = 0x2000, scoped, tag = 'output window, operand 0']
    %10 = vsyncpa [#allocation3], 0
    %s11 = scalar_lea.sflag [#allocation3], 1
    %12 = vsyncpa %s11, 0
    %13 = vsyncpa [#allocation6], 0
    %14 = vsyncpa [#allocation4], 0
    %s15 = scalar_lea.sflag [#allocation4], 1
    %16 = vsyncpa %s15, 0
    loop: start=0, step=1, limit=4
    $region2: #{tpu_custom_call.1} parent=1 // loop_pre_header
      _
    $region3: #{tpu_custom_call.1} parent=1 // loop_header
      %s18 = sphi 0, %s22
      %p19 = scmp.ge.s32.totalorder %s18, 4
      %s28 = sphi 0, %s30
      %s31 = sphi 0, %s28
      %s32 = sphi 0, %s31
      %s48 = sphi 0, %s32
      %s52 = sphi 0, %s52
      %s54 = sphi 0, %s52
      %s55 = sphi 0, %s54
      %s69 = sphi 0, %s55
      %s73 = sphi 0, %s73
      %s75 = sphi 0, %s73
      %s76 = sphi 0, %s75
      %s90 = sphi 0, %s76
      %s94 = sphi 0, %s94
      %s96 = sphi 0, %s94
      %s97 = sphi 0, %s96
      %s111 = sphi 0, %s97
      %s115 = sphi 0, %s115
      %s117 = sphi 0, %s115
      %s118 = sphi 0, %s117
      %s132 = sphi 0, %s118
      %s138 = sphi 0, %s140
      %s141 = sphi 0, %s138
      %s142 = sphi 0, %s141
      %s158 = sphi 0, %s142
    $region4: #{tpu_custom_call.1} parent=1 // loop_header_branch
      %21 = sbr.rel (%p19) target = $region8
    $region5: #{tpu_custom_call.1} parent=1 // loop_body
      %s23 = ssub.s32 %s18, 1
      %s24 = ssub.s32 %s18, 2
      %s25 = sadd.s32 %s18, 1
      %s26 = ssub.s32 %s18, %s25
      %p27 = scmp.eq.s32.totalorder %s26, 0
      %s29 = sadd.s32 %s28, 1
      %s30 = scalar_select %p27, %s28, %s29
      %p33 = pneg %p27
      %p34 = scmp.eq.s32.totalorder %s18, 1
      %p35 = por %p33, %p34
      %p36 = scmp.ne.s32.totalorder %s28, %s31
      %p37 = scmp.eq.s32.totalorder %s18, 0
      %p38 = por %p36, %p37
      %p39 = scmp.ne.s32.totalorder %s28, %s31
      %p40 = scmp.eq.s32.totalorder %s23, 1
      %p41 = por %p39, %p40
      %p42 = scmp.ne.s32.totalorder %s31, %s32
      %p43 = scmp.eq.s32.totalorder %s23, 0
      %p44 = por %p42, %p43
      %p45 = scmp.ne.s32.totalorder %s31, %s32
      %p46 = scmp.eq.s32.totalorder %s24, 1
      %p47 = por %p45, %p46
      %p49 = scmp.ne.s32.totalorder %s32, %s48
      %p50 = scmp.eq.s32.totalorder %s24, 0
      %p51 = por %p49, %p50
      %s53 = sadd.s32 %s52, 1
      %p56 = scmp.eq.s32.totalorder %s18, 1
      %p57 = scmp.ne.s32.totalorder %s52, %s54
      %p58 = scmp.eq.s32.totalorder %s18, 0
      %p59 = por %p57, %p58
      %p60 = scmp.ne.s32.totalorder %s52, %s54
      %p61 = scmp.eq.s32.totalorder %s23, 1
      %p62 = por %p60, %p61
      %p63 = scmp.ne.s32.totalorder %s54, %s55
      %p64 = scmp.eq.s32.totalorder %s23, 0
      %p65 = por %p63, %p64
      %p66 = scmp.ne.s32.totalorder %s54, %s55
      %p67 = scmp.eq.s32.totalorder %s24, 1
      %p68 = por %p66, %p67
      %p70 = scmp.ne.s32.totalorder %s55, %s69
      %p71 = scmp.eq.s32.totalorder %s24, 0
      %p72 = por %p70, %p71
      %s74 = sadd.s32 %s73, 1
      %p77 = scmp.eq.s32.totalorder %s18, 1
      %p78 = scmp.ne.s32.totalorder %s73, %s75
      %p79 = scmp.eq.s32.totalorder %s18, 0
      %p80 = por %p78, %p79
      %p81 = scmp.ne.s32.totalorder %s73, %s75
      %p82 = scmp.eq.s32.totalorder %s23, 1
      %p83 = por %p81, %p82
      %p84 = scmp.ne.s32.totalorder %s75, %s76
      %p85 = scmp.eq.s32.totalorder %s23, 0
      %p86 = por %p84, %p85
      %p87 = scmp.ne.s32.totalorder %s75, %s76
      %p88 = scmp.eq.s32.totalorder %s24, 1
      %p89 = por %p87, %p88
      %p91 = scmp.ne.s32.totalorder %s76, %s90
      %p92 = scmp.eq.s32.totalorder %s24, 0
      %p93 = por %p91, %p92
      %s95 = sadd.s32 %s94, 1
      %p98 = scmp.eq.s32.totalorder %s18, 1
      %p99 = scmp.ne.s32.totalorder %s94, %s96
      %p100 = scmp.eq.s32.totalorder %s18, 0
      %p101 = por %p99, %p100
      %p102 = scmp.ne.s32.totalorder %s94, %s96
      %p103 = scmp.eq.s32.totalorder %s23, 1
      %p104 = por %p102, %p103
      %p105 = scmp.ne.s32.totalorder %s96, %s97
      %p106 = scmp.eq.s32.totalorder %s23, 0
      %p107 = por %p105, %p106
      %p108 = scmp.ne.s32.totalorder %s96, %s97
      %p109 = scmp.eq.s32.totalorder %s24, 1
      %p110 = por %p108, %p109
      %p112 = scmp.ne.s32.totalorder %s97, %s111
      %p113 = scmp.eq.s32.totalorder %s24, 0
      %p114 = por %p112, %p113
      %s116 = sadd.s32 %s115, 1
      %p119 = scmp.eq.s32.totalorder %s18, 1
      %p120 = scmp.ne.s32.totalorder %s115, %s117
      %p121 = scmp.eq.s32.totalorder %s18, 0
      %p122 = por %p120, %p121
      %p123 = scmp.ne.s32.totalorder %s115, %s117
      %p124 = scmp.eq.s32.totalorder %s23, 1
      %p125 = por %p123, %p124
      %p126 = scmp.ne.s32.totalorder %s117, %s118
      %p127 = scmp.eq.s32.totalorder %s23, 0
      %p128 = por %p126, %p127
      %p129 = scmp.ne.s32.totalorder %s117, %s118
      %p130 = scmp.eq.s32.totalorder %s24, 1
      %p131 = por %p129, %p130
      %p133 = scmp.ne.s32.totalorder %s118, %s132
      %p134 = scmp.eq.s32.totalorder %s24, 0
      %p135 = por %p133, %p134
      %s136 = ssub.s32 %s18, %s25
      %p137 = scmp.eq.s32.totalorder %s136, 0
      %s139 = sadd.s32 %s138, 1
      %s140 = scalar_select %p137, %s138, %s139
      %p143 = pneg %p137
      %p144 = scmp.eq.s32.totalorder %s18, 1
      %p145 = por %p143, %p144
      %p146 = scmp.ne.s32.totalorder %s138, %s141
      %p147 = scmp.eq.s32.totalorder %s18, 0
      %p148 = por %p146, %p147
      %p149 = scmp.ne.s32.totalorder %s138, %s141
      %p150 = scmp.eq.s32.totalorder %s23, 1
      %p151 = por %p149, %p150
      %p152 = scmp.ne.s32.totalorder %s141, %s142
      %p153 = scmp.eq.s32.totalorder %s23, 0
      %p154 = por %p152, %p153
      %p155 = scmp.ne.s32.totalorder %s141, %s142
      %p156 = scmp.eq.s32.totalorder %s24, 1
      %p157 = por %p155, %p156
      %p159 = scmp.ne.s32.totalorder %s142, %s158
      %p160 = scmp.eq.s32.totalorder %s24, 0
      %p161 = por %p159, %p160
      %p162 = scmp.le.s32.totalorder 1, %s18
      %p163 = scmp.lt.s32.totalorder %s18, 3
      %p164 = pnand %p162, %p163
      %p165 = pneg %p164
      // Predicated region
      $region9: #{tpu_custom_call.1} parent=5 // pred_check
        _
      $region10: #{tpu_custom_call.1} parent=5 // pred_check_branch
        %167 = sbr.rel (%p164) target = $region12
      $region11: #{tpu_custom_call.1} parent=5 // pred_region
        %s168 = ssub.s32 %s18, 1
        // Predicated region
        $region13: #{tpu_custom_call.1} parent=11 // pred_check
          %p169 = pneg %p65
        $region14: #{tpu_custom_call.1} parent=11 // pred_check_branch
          %171 = sbr.rel (%p169) target = $region16
        $region15: #{tpu_custom_call.1} parent=11 // pred_region
          %s173 = ssub.s32 512, 512
          %174 = vsyncadd [#allocation6], %s173
          %s175 = sshll.u32 [#allocation5], 4
          %s176 = int_to_ptr.vmem [resolvable:$true] %s175
          %181 = dma.hbm_to_vmem [thread:$0]  %s1, 512, %s176, [#allocation6], 128, 128, 8
        $region16: #{tpu_custom_call.1} parent=11 // pred_fallthru
          _
        // Predicated region
        $region17: #{tpu_custom_call.1} parent=11 // pred_check
          %p182 = pneg %p86
        $region18: #{tpu_custom_call.1} parent=11 // pred_check_branch
          %184 = sbr.rel (%p182) target = $region20
        $region19: #{tpu_custom_call.1} parent=11 // pred_region
          _
        $region20: #{tpu_custom_call.1} parent=11 // pred_fallthru
          _
        // Predicated region
        $region21: #{tpu_custom_call.1} parent=11 // pred_check
          %p185 = pneg %p107
        $region22: #{tpu_custom_call.1} parent=11 // pred_check_branch
          %187 = sbr.rel (%p185) target = $region24
        $region23: #{tpu_custom_call.1} parent=11 // pred_region
          _
        $region24: #{tpu_custom_call.1} parent=11 // pred_fallthru
          _
        // Predicated region
        $region25: #{tpu_custom_call.1} parent=11 // pred_check
          %p188 = pneg %p128
        $region26: #{tpu_custom_call.1} parent=11 // pred_check_branch
          %190 = sbr.rel (%p188) target = $region28
        $region27: #{tpu_custom_call.1} parent=11 // pred_region
          _
        $region28: #{tpu_custom_call.1} parent=11 // pred_fallthru
          _
      $region12: #{tpu_custom_call.1} parent=5 // pred_fallthru
        _
      %p191 = scmp.lt.s32.totalorder %s18, 2
      // Predicated region
      $region29: #{tpu_custom_call.1} parent=5 // pred_check
        %p192 = pneg %p191
      $region30: #{tpu_custom_call.1} parent=5 // pred_check_branch
        %194 = sbr.rel (%p192) target = $region32
      $region31: #{tpu_custom_call.1} parent=5 // pred_region
        // Predicated region
        $region33: #{tpu_custom_call.1} parent=31 // pred_check
          %p195 = pneg %p38
        $region34: #{tpu_custom_call.1} parent=31 // pred_check_branch
          %197 = sbr.rel (%p195) target = $region36
        $region35: #{tpu_custom_call.1} parent=31 // pred_region
          %s198 = sand.u32 %s28, 1
          %s199 = scalar_lea.sflag [#allocation3], %s198
          %s200 = sand.u32 %s28, 1
          %s201 = smul.addr %s200, 8
          %s202 = scalar_lea.vmem [#allocation2], %s201
          %s204 = ssub.s32 128, 128
          %205 = vsyncadd %s199, %s204
          %s206 = smul.addr %s18, 128
          %s207 = scalar_lea.hbm %s0, %s206
          %s209 = sshll.u32 %s202, 4
          %s210 = int_to_ptr.vmem [resolvable:$true] %s209
          %212 = dma.hbm_to_vmem [thread:$0]  %s207, 128, %s210, %s199
        $region36: #{tpu_custom_call.1} parent=31 // pred_fallthru
          _
      $region32: #{tpu_custom_call.1} parent=5 // pred_fallthru
        _
      %p213 = scmp.le.s32.totalorder 1, %s18
      %p214 = scmp.lt.s32.totalorder %s18, 3
      %p215 = pnand %p213, %p214
      %p216 = pneg %p215
      // Predicated region
      $region37: #{tpu_custom_call.1} parent=5 // pred_check
        _
      $region38: #{tpu_custom_call.1} parent=5 // pred_check_branch
        %218 = sbr.rel (%p215) target = $region40
      $region39: #{tpu_custom_call.1} parent=5 // pred_region
        %s219 = ssub.s32 %s18, 1
        %s220 = sand.u32 %s31, 1
        %s221 = scalar_lea.sflag [#allocation3], %s220
        %s222 = sand.u32 %s31, 1
        %s223 = smul.addr %s222, 8
        %s224 = scalar_lea.vmem [#allocation2], %s223
        // Predicated region
        $region41: #{tpu_custom_call.1} parent=39 // pred_check
          %p225 = pneg %p44
        $region42: #{tpu_custom_call.1} parent=39 // pred_check_branch
          %227 = sbr.rel (%p225) target = $region44
        $region43: #{tpu_custom_call.1} parent=39 // pred_region
          %228 = dma.done %s221, 128
        $region44: #{tpu_custom_call.1} parent=39 // pred_fallthru
          _
        // Predicated region
        $region45: #{tpu_custom_call.1} parent=39 // pred_check
          %p229 = pneg %p65
        $region46: #{tpu_custom_call.1} parent=39 // pred_check_branch
          %231 = sbr.rel (%p229) target = $region48
        $region47: #{tpu_custom_call.1} parent=39 // pred_region
          %232 = dma.done [#allocation6], 512
        $region48: #{tpu_custom_call.1} parent=39 // pred_fallthru
          _
        %s233 = sand.u32 %s31, 1
        %s234 = scalar_lea.sflag [#allocation3], %s233
        %s235 = sand.u32 %s31, 1
        %s236 = smul.addr %s235, 8
        %s237 = scalar_lea.vmem [#allocation2], %s236
        %p238 = pneg %p44
        %p239 = pneg %p41
        %p240 = pneg %p65
        %p241 = pneg %p62
        %p242 = pneg %p86
        %p243 = pneg %p83
        %p244 = pneg %p107
        %p245 = pneg %p104
        %p246 = pneg %p128
        %p247 = pneg %p125
        %p248 = pneg %p154
        %p249 = pneg %p151
        %s250 = sand.u32 %s141, 1
        %s251 = scalar_lea.sflag [#allocation4], %s250
        %s252 = sand.u32 %s141, 1
        %s253 = smul.addr %s252, 8
        %s254 = scalar_lea.vmem [#allocation7], %s253
        %v256 = vld [vmem:[%s224] sm:$0xff]
        %v257 = vpack.c.bf16 %v256, %v256
        %v258 = vld [vmem:[#allocation5] sm:$0xff]
        %v259 = vld [vmem:[#allocation5 + $0x8] sm:$0xff]
        %v260 = vld [vmem:[#allocation5 + $0x10] sm:$0xff]
        %v261 = vld [vmem:[#allocation5 + $0x18] sm:$0xff]
        %v262 = vpack.c.bf16 %v259, %v258
        %v263 = vpack.c.bf16 %v261, %v260
        %v264 = vld [vmem:[%s2] sm:$0x1]
        %v266 = vlaneseq
        %v267 = vshrl.u32 %v266, 7
        %v268 = vsub.s32 0, %v267
        %v269 = vrot.slane %v264, %v268
        %vm271 = vcmask 261120
        %v273 = vsel %vm271, %v257, 0
        %275 = vmatprep.subr.bf16.mxu0 0
        %276 = vmatpush1.bf16.msra.mxu0 %v262
        %277 = vmatprep.subr.bf16.mxu0 0
        %278 = vmatpush1.bf16.msra.mxu0 %v263
        %279 = vmatprep.subr.bf16.mxu0 0
        %280 = vmatpush1.bf16.msra.mxu0 0
        %281 = vmatprep.subr.bf16.mxu0 0
        %282 = vmatpush1.bf16.msra.mxu0 0
        %283 = vmatprep.subr.bf16.mxu0 0
        %284 = vmatpush1.bf16.msra.mxu0 0
        %285 = vmatprep.subr.bf16.mxu0 0
        %286 = vmatpush1.bf16.msra.mxu0 0
        %287 = vmatprep.subr.bf16.mxu0 0
        %288 = vmatpush1.bf16.msra.mxu0 0
        %289 = vmatprep.subr.bf16.mxu0 0
        %290 = vmatpush1.bf16.msra.mxu0 0
        %291 = vmatprep.subr.bf16.mxu0 0
        %292 = vmatpush1.bf16.msra.mxu0 0
        %293 = vmatprep.subr.bf16.mxu0 0
        %294 = vmatpush1.bf16.msra.mxu0 0
        %295 = vmatprep.subr.bf16.mxu0 0
        %296 = vmatpush1.bf16.msra.mxu0 0
        %297 = vmatprep.subr.bf16.mxu0 0
        %298 = vmatpush1.bf16.msra.mxu0 0
        %299 = vmatprep.subr.bf16.mxu0 0
        %300 = vmatpush1.bf16.msra.mxu0 0
        %301 = vmatprep.subr.bf16.mxu0 0
        %302 = vmatpush1.bf16.msra.mxu0 0
        %303 = vmatprep.subr.bf16.mxu0 0
        %304 = vmatpush1.bf16.msra.mxu0 0
        %305 = vmatprep.subr.bf16.mxu0 0
        %306 = vmatpush1.bf16.msra.mxu0 0
        %307 = vmatprep.mubr.bf16.mxu0 0
        %308 = vmatmul.mubr.bf16.gmra.mrb[0].mxu0 %v273
        %v309 = vpop.f32.mrb[0].mxu0
        %v310 = vadd.f32 %v269, %v309
        %v311 = vpop.f32.mrb[0].mxu0
        %v312 = vpop.f32.mrb[0].mxu0
        %v313 = vpop.f32.mrb[0].mxu0
        %314 = vdwg.mxu0
        %v315 = vmul.f32 %v310, 0.5
        %v316 = vmul.f32 %v310, 0.70710677
        %v317 = verf.f32.pop %v316
        %v318 = vadd.f32 %v317, 1.0
        %v319 = vmul.f32 %v315, %v318
        %v320 = vsel %vm271, %v319, 0.0
        %321 = vadd.xlane.f32.xlu0 %v320
        %v322 = vpop.xlane.xlu0 %321
        %v323 = vmul.f32 %v319, %v319
        %v324 = vsel %vm271, %v323, 0.0
        %325 = vadd.xlane.f32.xlu0 %v324
        %v326 = vpop.xlane.xlu0 %325
        %v327 = vmul.f32 %v322, 0.03125
        %v328 = vmul.f32 %v326, 0.03125
        %v329 = vmul.f32 %v327, %v327
        %v330 = vsub.f32 %v328, %v329
        %v331 = vadd.f32 %v330, 1e-12
        %v332 = vrsqrt.pop %v331
        %v333 = vsub.f32 %v319, %v327
        %v334 = vmul.f32 %v333, %v332
        %v335 = vld [vmem:[%s3] sm:$0x1]
        %v337 = vlaneseq
        %v338 = vshrl.u32 %v337, 7
        %v339 = vsub.s32 0, %v338
        %v340 = vrot.slane %v335, %v339
        %v342 = vmul.f32 %v334, %v340
        %v343 = vld [vmem:[%s4] sm:$0x1]
        %v345 = vlaneseq
        %v346 = vshrl.u32 %v345, 7
        %v347 = vsub.s32 0, %v346
        %v348 = vrot.slane %v343, %v347
        %v350 = vadd.f32 %v342, %v348
        %351 = vst.msk [vmem:[%s254] sm:$0xff] %vm271, %v350
        %s352 = sand.u32 %s141, 1
        %s353 = scalar_lea.sflag [#allocation4], %s352
        %s354 = sand.u32 %s141, 1
        %s355 = smul.addr %s354, 8
        %s356 = scalar_lea.vmem [#allocation7], %s355
        // Predicated region
        $region49: #{tpu_custom_call.1} parent=39 // pred_check
          %p357 = pneg %p151
        $region50: #{tpu_custom_call.1} parent=39 // pred_check_branch
          %359 = sbr.rel (%p357) target = $region52
        $region51: #{tpu_custom_call.1} parent=39 // pred_region
          %s361 = ssub.s32 128, 128
          %362 = vsyncadd %s353, %s361
          %s363 = smul.addr %s23, 128
          %s364 = scalar_lea.hbm %s5, %s363
          %s366 = sshll.u32 %s356, 4
          %s367 = int_to_ptr.vmem [resolvable:$true] %s366
          %369 = dma.vmem_to_hbm [thread:$0]  %s367, 128, %s364, %s353
        $region52: #{tpu_custom_call.1} parent=39 // pred_fallthru
          _
      $region40: #{tpu_custom_call.1} parent=5 // pred_fallthru
        _
      %p370 = scmp.le.s32.totalorder 2, %s18
      // Predicated region
      $region53: #{tpu_custom_call.1} parent=5 // pred_check
        %p371 = pneg %p370
      $region54: #{tpu_custom_call.1} parent=5 // pred_check_branch
        %373 = sbr.rel (%p371) target = $region56
      $region55: #{tpu_custom_call.1} parent=5 // pred_region
        %s374 = ssub.s32 %s18, 2
        // Predicated region
        $region57: #{tpu_custom_call.1} parent=55 // pred_check
          %p375 = pneg %p157
        $region58: #{tpu_custom_call.1} parent=55 // pred_check_branch
          %377 = sbr.rel (%p375) target = $region60
        $region59: #{tpu_custom_call.1} parent=55 // pred_region
          %s378 = sand.u32 %s142, 1
          %s379 = scalar_lea.sflag [#allocation4], %s378
          %s380 = sand.u32 %s142, 1
          %s381 = smul.addr %s380, 8
          %s382 = scalar_lea.vmem [#allocation7], %s381
          %383 = dma.done %s379, 128
        $region60: #{tpu_custom_call.1} parent=55 // pred_fallthru
          _
      $region56: #{tpu_custom_call.1} parent=5 // pred_fallthru
        _
    $region6: #{tpu_custom_call.1} parent=1 // loop_footer
      %s22 = sadd.s32 1, %s18
    $region7: #{tpu_custom_call.1} parent=1 // loop_footer_branch
      %17 = sbr.rel target = $region3
    $region8: #{tpu_custom_call.1} parent=1 // loop_exit
      _
    %384 = vsyncpa [#allocation3], 1
    %s385 = scalar_lea.sflag [#allocation3], 1
    %386 = vsyncpa %s385, 1
    %387 = vsyncpa [#allocation6], 1
    %388 = vsyncpa [#allocation4], 1
    %s389 = scalar_lea.sflag [#allocation4], 1
    %390 = vsyncpa %s389, 1

</llo_original>
